<compile_context>
chip_gen: v7x
topology: tpu7x:2x2x1
jax: 0.10.0
libtpu: 0.0.40
codegen_flags: <defaults>
</compile_context>

<pallas_src>
import functools
import math

import jax
import jax.numpy as jnp
import numpy as np
from jax.experimental import pallas as pl
from jax.experimental.pallas import tpu as pltpu


# ------------------------------- kernel -------------------------------------


def _sinkhorn_kernel(c_ref, cost_ref, pi_ref, *, eps, max_iter, thresh, exp_dtype):
    """Full Sinkhorn solve for a batch of cost matrices, entirely in VMEM.

    c_ref    : (B, P1, P2) f32   cost matrix C
    cost_ref : (B, 1, 1)   f32   per-sample OT cost  sum(pi * C)
    pi_ref   : (B, P1, P2) f32   transport plan      exp(M(C, u, v))
    """
    B, P1, P2 = c_ref.shape
    inv_eps = 1.0 / eps
    inv_b = 1.0 / B

    # Single resident full-matrix loop invariant.  C itself is NOT kept live
    # across the while_loop; it is re-read from c_ref once at the very end.
    neg_c_over_eps = c_ref[...] * (-inv_eps)

    log_mu = math.log(1.0 / P1 + 1e-8)          # mu is the constant 1/P1
    log_nu = math.log(1.0 / P2 + 1e-8)          # nu is the constant 1/P2

    def modified_cost(u_hat, v_hat):
        # M_ij = (-C_ij + u_i + v_j)/eps, with u_hat = u/eps, v_hat = v/eps:
        # pure broadcast adds over the full matrix, no per-iteration 1/eps mul.
        return neg_c_over_eps + u_hat + v_hat

    def lse_rows(m):   # logsumexp over the last (lane) axis     -> (B, P1, 1)
        mx = jnp.max(m, axis=-1, keepdims=True)
        e = jnp.exp((m - mx).astype(exp_dtype)).astype(jnp.float32)
        return mx + jnp.log(jnp.sum(e, axis=-1, keepdims=True))

    def lse_cols(m):   # logsumexp over axis -2 (sublane axis)   -> (B, 1, P2)
        mx = jnp.max(m, axis=-2, keepdims=True)
        e = jnp.exp((m - mx).astype(exp_dtype)).astype(jnp.float32)
        return mx + jnp.log(jnp.sum(e, axis=-2, keepdims=True))

    def body(state):
        it, u_hat, v_hat, _ = state
        # u_new = eps*(log_mu - lse) + u   <=>   u_hat_new = u_hat + du
        du = log_mu - lse_rows(modified_cost(u_hat, v_hat))
        u_hat = u_hat + du
        dv = log_nu - lse_cols(modified_cost(u_hat, v_hat))
        v_hat = v_hat + dv
        # err = |u_new - u_prev|.sum(-1).mean() = eps * sum|du| / B
        err = eps * jnp.sum(jnp.abs(du)) * inv_b
        return it + 1, u_hat, v_hat, err

    def cond(state):
        it, _, _, err = state
        return jnp.logical_and(it < max_iter, err >= thresh)

    init = (
        jnp.int32(0),
        jnp.zeros((B, P1, 1), jnp.float32),
        jnp.zeros((B, 1, P2), jnp.float32),
        jnp.float32(jnp.inf),
    )
    _, u_hat, v_hat, _ = jax.lax.while_loop(cond, body, init)

    pi = jnp.exp(modified_cost(u_hat, v_hat))     # final exp kept in f32
    pi_ref[...] = pi
    C = c_ref[...]                                # re-read: short live range
    cost_ref[...] = jnp.sum(
        jnp.sum(pi * C, axis=-1, keepdims=True), axis=-2, keepdims=True
    )


# ------------------------------ wrapper --------------------------------------


def _eup_supports_bf16():
    """bf16 transcendentals are worthwhile on v6e / v7x EUP; f32 elsewhere."""
    try:
        kind = jax.devices()[0].device_kind.lower().replace(" ", "")
    except Exception:
        return False
    return ("v6" in kind) or ("v7" in kind) or ("tpu7" in kind)


def sinkhorn_forward(x, y, C, *, eps, max_iter, reduction="none", thresh=0.1):
    """Pallas equivalent of SinkhornDistance_custom(eps, max_iter, reduction)(x, y, C)."""
    C_in = C
    squeeze = C.ndim == 2          # unbatched case (x.dim() == 2 in PyTorch)
    if squeeze:
        C = C[None]
    B, P1, P2 = C.shape
    assert x.shape[-2] == P1 and y.shape[-2] == P2, "C must be (B, P1, P2)"

    exp_dtype = jnp.bfloat16 if _eup_supports_bf16() else jnp.float32

    # Footprint: resident -C/eps + pi output + C input block + a few
    # elementwise temporaries, plus headroom.  Clamp to safe scoped limits.
    mat_bytes = B * P1 * P2 * 4
    vmem_limit = int(min(max(10 * mat_bytes + (4 << 20), 16 << 20), 60 << 20))

    kernel = functools.partial(
        _sinkhorn_kernel,
        eps=float(eps),
        max_iter=int(max_iter),
        thresh=float(thresh),
        exp_dtype=exp_dtype,
    )
    vmem = pltpu.MemorySpace.VMEM
    cost, pi = pl.pallas_call(
        kernel,
        # No grid: single whole-array block, no useless double-buffering.
        out_shape=(
            jax.ShapeDtypeStruct((B, 1, 1), jnp.float32),
            jax.ShapeDtypeStruct((B, P1, P2), jnp.float32),
        ),
        in_specs=[pl.BlockSpec(memory_space=vmem)],
        out_specs=(
            pl.BlockSpec(memory_space=vmem),
            pl.BlockSpec(memory_space=vmem),
        ),
        compiler_params=pltpu.CompilerParams(vmem_limit_bytes=vmem_limit),
    )(C.astype(jnp.float32))

    cost = cost.reshape(B)
    if squeeze:
        cost = cost[0]
        pi = pi[0]
    if reduction == "mean":
        cost = jnp.mean(cost)
    elif reduction == "sum":
        cost = jnp.sum(cost)
    return cost, pi, C_in


# ------------------------- pure-numpy reference -------------------------------


def _sinkhorn_reference(C, eps, max_iter, thresh=0.1):
    """Direct transcription of the PyTorch forward (numpy, f32)."""
    C = np.asarray(C, dtype=np.float32)
    B, P1, P2 = C.shape
    mu = np.full((B, P1), 1.0 / P1, dtype=np.float32)
    nu = np.full((B, P2), 1.0 / P2, dtype=np.float32)
    u = np.zeros_like(mu)
    v = np.zeros_like(nu)

    def M(u_, v_):
        return (-C + u_[:, :, None] + v_[:, None, :]) / eps

    def lse(m, axis):
        mx = np.max(m, axis=axis, keepdims=True)
        return np.squeeze(mx + np.log(np.sum(np.exp(m - mx), axis=axis, keepdims=True)), axis)

    for _ in range(max_iter):
        u1 = u
        u = eps * (np.log(mu + 1e-8) - lse(M(u, v), -1)) + u
        v = eps * (np.log(nu + 1e-8) - lse(M(u, v), -2)) + v
        err = np.abs(u - u1).sum(-1).mean()
        if err < thresh:
            break
    pi = np.exp(M(u, v))
    cost = np.sum(pi * C, axis=(-2, -1))
    return cost, pi


# --------------------------------- main ---------------------------------------


if __name__ == "__main__":
    key = jax.random.PRNGKey(0)
    kx, ky = jax.random.split(key)

    # Small but lane-dense point clouds: batch=2, 128 points each, feature dim 4.
    B, P1, P2, D = 2, 128, 128, 4
    eps_reg, max_iter = 0.1, 100

    x = jax.random.normal(kx, (B, P1, D), dtype=jnp.float32)
    y = jax.random.normal(ky, (B, P2, D), dtype=jnp.float32)
    # C = |x_i - y_j|^2 (the module's _cost_matrix with p=2), built once outside
    # forward(), exactly as the PyTorch module expects C to be provided.
    C = jnp.sum(jnp.abs(x[:, :, None, :] - y[:, None, :, :]) ** 2, axis=-1)

    cost, pi, C_out = sinkhorn_forward(
        x, y, C, eps=eps_reg, max_iter=max_iter, reduction="none"
    )
    jax.block_until_ready((cost, pi))

    # sanity check against a direct numpy transcription of the PyTorch forward
    cost_np = np.asarray(cost)
    pi_np = np.asarray(pi)
    cost_ref, pi_ref = _sinkhorn_reference(np.asarray(C), eps_reg, max_iter)

    assert np.all(np.isfinite(cost_np)) and np.all(np.isfinite(pi_np))
    assert np.allclose(cost_np, cost_ref, rtol=1e-1, atol=1e-3), (cost_np, cost_ref)
    assert np.allclose(pi_np, pi_ref, rtol=1e-1, atol=1e-4)

    print("KERNEL_OK")
</pallas_src>

<mosaic_0001>
module attributes {stable_mosaic.version = 11 : i64} {
  func.func @_sinkhorn_kernel(%arg0: memref<2x128x128xf32, #tpu.memory_space<vmem>>, %arg1: memref<2x1x1xf32, #tpu.memory_space<vmem>>, %arg2: memref<2x128x128xf32, #tpu.memory_space<vmem>>) attributes {dimension_semantics = [], scalar_prefetch = 0 : i64, scratch_operands = 0 : i64, tpu.core_type = #tpu.core_type<tc>} {
    %c0 = arith.constant 0 : index
    %c0_0 = arith.constant 0 : index
    %c0_1 = arith.constant 0 : index
    %0 = vector.load %arg0[%c0, %c0_0, %c0_1] : memref<2x128x128xf32, #tpu.memory_space<vmem>>, vector<2x128x128xf32>
    %cst = arith.constant -1.000000e+01 : f32
    %1 = vector.broadcast %cst : f32 to vector<2x128x128xf32>
    %2 = arith.mulf %0, %1 : vector<2x128x128xf32>
    %cst_2 = arith.constant 0.000000e+00 : f32
    %3 = vector.broadcast %cst_2 : f32 to vector<2x128x1xf32>
    %cst_3 = arith.constant 0.000000e+00 : f32
    %4 = vector.broadcast %cst_3 : f32 to vector<2x1x128xf32>
    %c0_i32 = arith.constant 0 : i32
    %cst_4 = arith.constant 0x7F800000 : f32
    %5:4 = scf.while (%arg3 = %c0_i32, %arg4 = %3, %arg5 = %4, %arg6 = %cst_4) : (i32, vector<2x128x1xf32>, vector<2x1x128xf32>, f32) -> (i32, vector<2x128x1xf32>, vector<2x1x128xf32>, f32) {
      %c100_i32 = arith.constant 100 : i32
      %19 = arith.cmpi slt, %arg3, %c100_i32 : i32
      %cst_16 = arith.constant 1.000000e-01 : f32
      %20 = arith.cmpf oge, %arg6, %cst_16 : f32
      %21 = arith.andi %19, %20 : i1
      scf.condition(%21) %arg3, %arg4, %arg5, %arg6 : i32, vector<2x128x1xf32>, vector<2x1x128xf32>, f32
    } do {
    ^bb0(%arg3: i32, %arg4: vector<2x128x1xf32>, %arg5: vector<2x1x128xf32>, %arg6: f32):
      %19 = vector.broadcast %arg4 : vector<2x128x1xf32> to vector<2x128x128xf32>
      %20 = arith.addf %2, %19 : vector<2x128x128xf32>
      %21 = vector.broadcast %arg5 : vector<2x1x128xf32> to vector<2x128x128xf32>
      %22 = arith.addf %20, %21 : vector<2x128x128xf32>
      %cst_16 = arith.constant dense<0xFF800000> : vector<2x128xf32>
      %23 = vector.multi_reduction <maximumf>, %22, %cst_16 [2] : vector<2x128x128xf32> to vector<2x128xf32>
      %24 = vector.shape_cast %23 : vector<2x128xf32> to vector<2x128x1xf32>
      %25 = vector.broadcast %24 : vector<2x128x1xf32> to vector<2x128x128xf32>
      %26 = arith.subf %22, %25 : vector<2x128x128xf32>
      %27 = math.exp %26 : vector<2x128x128xf32>
      %cst_17 = arith.constant dense<0.000000e+00> : vector<2x128xf32>
      %28 = vector.multi_reduction <add>, %27, %cst_17 [2] : vector<2x128x128xf32> to vector<2x128xf32>
      %29 = vector.shape_cast %28 : vector<2x128xf32> to vector<2x128x1xf32>
      %30 = math.log %29 : vector<2x128x1xf32>
      %31 = arith.addf %24, %30 : vector<2x128x1xf32>
      %cst_18 = arith.constant -4.85202885 : f32
      %32 = vector.broadcast %cst_18 : f32 to vector<2x128x1xf32>
      %33 = arith.subf %32, %31 : vector<2x128x1xf32>
      %34 = arith.addf %arg4, %33 : vector<2x128x1xf32>
      %35 = vector.broadcast %34 : vector<2x128x1xf32> to vector<2x128x128xf32>
      %36 = arith.addf %2, %35 : vector<2x128x128xf32>
      %37 = vector.broadcast %arg5 : vector<2x1x128xf32> to vector<2x128x128xf32>
      %38 = arith.addf %36, %37 : vector<2x128x128xf32>
      %cst_19 = arith.constant dense<0xFF800000> : vector<2x128xf32>
      %39 = vector.multi_reduction <maximumf>, %38, %cst_19 [1] : vector<2x128x128xf32> to vector<2x128xf32>
      %40 = vector.shape_cast %39 : vector<2x128xf32> to vector<2x1x128xf32>
      %41 = vector.broadcast %40 : vector<2x1x128xf32> to vector<2x128x128xf32>
      %42 = arith.subf %38, %41 : vector<2x128x128xf32>
      %43 = math.exp %42 : vector<2x128x128xf32>
      %cst_20 = arith.constant dense<0.000000e+00> : vector<2x128xf32>
      %44 = vector.multi_reduction <add>, %43, %cst_20 [1] : vector<2x128x128xf32> to vector<2x128xf32>
      %45 = vector.shape_cast %44 : vector<2x128xf32> to vector<2x1x128xf32>
      %46 = math.log %45 : vector<2x1x128xf32>
      %47 = arith.addf %40, %46 : vector<2x1x128xf32>
      %cst_21 = arith.constant -4.85202885 : f32
      %48 = vector.broadcast %cst_21 : f32 to vector<2x1x128xf32>
      %49 = arith.subf %48, %47 : vector<2x1x128xf32>
      %50 = arith.addf %arg5, %49 : vector<2x1x128xf32>
      %51 = math.absf %33 : vector<2x128x1xf32>
      %52 = vector.shape_cast %51 : vector<2x128x1xf32> to vector<1x2x128x1xf32>
      %cst_22 = arith.constant dense<0.000000e+00> : vector<1xf32>
      %53 = vector.multi_reduction <add>, %52, %cst_22 [1, 2, 3] : vector<1x2x128x1xf32> to vector<1xf32>
      %54 = vector.shape_cast %53 : vector<1xf32> to vector<1x1x1x1xf32>
      %55 = vector.extract %54[0, 0, 0, 0] : f32 from vector<1x1x1x1xf32>
      %cst_23 = arith.constant 1.000000e-01 : f32
      %56 = arith.mulf %cst_23, %55 : f32
      %cst_24 = arith.constant 5.000000e-01 : f32
      %57 = arith.mulf %56, %cst_24 : f32
      %c1_i32 = arith.constant 1 : i32
      %58 = arith.addi %arg3, %c1_i32 : i32
      scf.yield %58, %34, %50, %57 : i32, vector<2x128x1xf32>, vector<2x1x128xf32>, f32
    }
    %6 = vector.broadcast %5#1 : vector<2x128x1xf32> to vector<2x128x128xf32>
    %7 = arith.addf %2, %6 : vector<2x128x128xf32>
    %8 = vector.broadcast %5#2 : vector<2x1x128xf32> to vector<2x128x128xf32>
    %9 = arith.addf %7, %8 : vector<2x128x128xf32>
    %10 = math.exp %9 : vector<2x128x128xf32>
    %c0_5 = arith.constant 0 : index
    %c0_6 = arith.constant 0 : index
    %c0_7 = arith.constant 0 : index
    %11 = vector.load %arg2[%c0_5, %c0_6, %c0_7] : memref<2x128x128xf32, #tpu.memory_space<vmem>>, vector<2x128x128xf32>
    tpu.vector_store %arg2[%c0_5, %c0_6, %c0_7], %10 {strides = array<i32>} : memref<2x128x128xf32, #tpu.memory_space<vmem>>, vector<2x128x128xf32>,
    %c0_8 = arith.constant 0 : index
    %c0_9 = arith.constant 0 : index
    %c0_10 = arith.constant 0 : index
    %12 = vector.load %arg0[%c0_8, %c0_9, %c0_10] : memref<2x128x128xf32, #tpu.memory_space<vmem>>, vector<2x128x128xf32>
    %13 = arith.mulf %10, %12 : vector<2x128x128xf32>
    %cst_11 = arith.constant dense<0.000000e+00> : vector<2x128xf32>
    %14 = vector.multi_reduction <add>, %13, %cst_11 [2] : vector<2x128x128xf32> to vector<2x128xf32>
    %15 = vector.shape_cast %14 : vector<2x128xf32> to vector<2x128x1xf32>
    %cst_12 = arith.constant dense<0.000000e+00> : vector<2x1xf32>
    %16 = vector.multi_reduction <add>, %15, %cst_12 [1] : vector<2x128x1xf32> to vector<2x1xf32>
    %17 = vector.shape_cast %16 : vector<2x1xf32> to vector<2x1x1xf32>
    %c0_13 = arith.constant 0 : index
    %c0_14 = arith.constant 0 : index
    %c0_15 = arith.constant 0 : index
    %18 = vector.load %arg1[%c0_13, %c0_14, %c0_15] : memref<2x1x1xf32, #tpu.memory_space<vmem>>, vector<2x1x1xf32>
    tpu.vector_store %arg1[%c0_13, %c0_14, %c0_15], %17 {strides = array<i32>} : memref<2x1x1xf32, #tpu.memory_space<vmem>>, vector<2x1x1xf32>,
    return
  }
}

</mosaic_0001>

<llo_original>
// kernel: tpu_custom_call.1
$region0: #{tpu_custom_call.1}
  #allocation0 [shape = 'u32[]', space=smem, size = 0x4, offset = 0x4, fixed_abs, tag = 'smem constant byte address 0x4 - core index']
  #allocation1 [shape = 'u32[144,128]{1,0:T(1,128)}', space=vmem, size = 0x12000, scoped, tag = 'internal scratch']
  %s0 = inlined_call_operand.hbm [shape: f32[2,128,128], index: 0, kind: input, shape index: {}]
  %s1 = inlined_call_operand.vmem [shape: f32[2,1,1], index: 1, kind: output, shape index: {0}]
  %s2 = inlined_call_operand.hbm [shape: f32[2,128,128], index: 2, kind: output, shape index: {1}]
  %3 = xla_tuple %s1, %s2
  %s4 = sld [smem:[#allocation0]]
  $region33: #{tpu_custom_call.1} parent=0
    _
  %s6 = ssub.s32 1, %s4
  %s7 = scalar_select 0, %s6, %s4
  $region1: #{tpu_custom_call.1} parent=0
    #allocation2 [shape = 'u8[131072]{0}', space=vmem, size = 0x20000, scoped, tag = 'input window, operand 0, single buffered']
    #allocation3 [shape = 's32[1]{0}', space=sflag, size = 0x4, scoped, tag = 'scoped memory for tpu_custom_call.1']
    #allocation4 [shape = 's32[1]{0}', space=sflag, size = 0x4, scoped, tag = 'scoped memory for tpu_custom_call.1']
    #allocation5 [shape = 'u8[131072]{0}', space=vmem, size = 0x20000, scoped, tag = 'output window, operand 1, single buffered']
    %8 = vsyncpa [#allocation3], 0
    %9 = vsyncpa [#allocation4], 0
    // Predicated region
    $region2: #{tpu_custom_call.1} parent=1 // pred_check
      _
    $region3: #{tpu_custom_call.1} parent=1 // pred_check_branch
      %11 = sbr.rel (0) target = $region5
    $region4: #{tpu_custom_call.1} parent=1 // pred_region
      %s13 = ssub.s32 4096, 4096
      %14 = vsyncadd [#allocation3], %s13
      %s15 = sshll.u32 [#allocation2], 4
      %s16 = int_to_ptr.vmem [resolvable:$true] %s15
      %21 = dma.hbm_to_vmem [thread:$0]  %s0, 4096, %s16, [#allocation3], 128, 128, 8
    $region5: #{tpu_custom_call.1} parent=1 // pred_fallthru
      _
    // Predicated region
    $region6: #{tpu_custom_call.1} parent=1 // pred_check
      _
    $region7: #{tpu_custom_call.1} parent=1 // pred_check_branch
      %23 = sbr.rel (0) target = $region9
    $region8: #{tpu_custom_call.1} parent=1 // pred_region
      %24 = dma.done [#allocation3], 4096
    $region9: #{tpu_custom_call.1} parent=1 // pred_fallthru
      _
    %v25 = vld [vmem:[#allocation2] sm:$0xff]
    %v26 = vld [vmem:[#allocation2 + $0x8] sm:$0xff]
    %v27 = vld [vmem:[#allocation2 + $0x10] sm:$0xff]
    %v28 = vld [vmem:[#allocation2 + $0x18] sm:$0xff]
    %v29 = vld [vmem:[#allocation2 + $0x20] sm:$0xff]
    %v30 = vld [vmem:[#allocation2 + $0x28] sm:$0xff]
    %v31 = vld [vmem:[#allocation2 + $0x30] sm:$0xff]
    %v32 = vld [vmem:[#allocation2 + $0x38] sm:$0xff]
    %v33 = vld [vmem:[#allocation2 + $0x40] sm:$0xff]
    %v34 = vld [vmem:[#allocation2 + $0x48] sm:$0xff]
    %v35 = vld [vmem:[#allocation2 + $0x50] sm:$0xff]
    %v36 = vld [vmem:[#allocation2 + $0x58] sm:$0xff]
    %v37 = vld [vmem:[#allocation2 + $0x60] sm:$0xff]
    %v38 = vld [vmem:[#allocation2 + $0x68] sm:$0xff]
    %v39 = vld [vmem:[#allocation2 + $0x70] sm:$0xff]
    %v40 = vld [vmem:[#allocation2 + $0x78] sm:$0xff]
    %v41 = vld [vmem:[#allocation2 + $0x80] sm:$0xff]
    %v42 = vld [vmem:[#allocation2 + $0x88] sm:$0xff]
    %v43 = vld [vmem:[#allocation2 + $0x90] sm:$0xff]
    %v44 = vld [vmem:[#allocation2 + $0x98] sm:$0xff]
    %v45 = vld [vmem:[#allocation2 + $0xa0] sm:$0xff]
    %v46 = vld [vmem:[#allocation2 + $0xa8] sm:$0xff]
    %v47 = vld [vmem:[#allocation2 + $0xb0] sm:$0xff]
    %v48 = vld [vmem:[#allocation2 + $0xb8] sm:$0xff]
    %v49 = vld [vmem:[#allocation2 + $0xc0] sm:$0xff]
    %v50 = vld [vmem:[#allocation2 + $0xc8] sm:$0xff]
    %v51 = vld [vmem:[#allocation2 + $0xd0] sm:$0xff]
    %v52 = vld [vmem:[#allocation2 + $0xd8] sm:$0xff]
    %v53 = vld [vmem:[#allocation2 + $0xe0] sm:$0xff]
    %v54 = vld [vmem:[#allocation2 + $0xe8] sm:$0xff]
    %v55 = vld [vmem:[#allocation2 + $0xf0] sm:$0xff]
    %v56 = vld [vmem:[#allocation2 + $0xf8] sm:$0xff]
    %v57 = vmul.f32 %v25, -10.0
    %v58 = vmul.f32 %v26, -10.0
    %v59 = vmul.f32 %v27, -10.0
    %v60 = vmul.f32 %v28, -10.0
    %v61 = vmul.f32 %v29, -10.0
    %v62 = vmul.f32 %v30, -10.0
    %v63 = vmul.f32 %v31, -10.0
    %v64 = vmul.f32 %v32, -10.0
    %v65 = vmul.f32 %v33, -10.0
    %v66 = vmul.f32 %v34, -10.0
    %v67 = vmul.f32 %v35, -10.0
    %v68 = vmul.f32 %v36, -10.0
    %v69 = vmul.f32 %v37, -10.0
    %v70 = vmul.f32 %v38, -10.0
    %v71 = vmul.f32 %v39, -10.0
    %v72 = vmul.f32 %v40, -10.0
    %v73 = vmul.f32 %v41, -10.0
    %v74 = vmul.f32 %v42, -10.0
    %v75 = vmul.f32 %v43, -10.0
    %v76 = vmul.f32 %v44, -10.0
    %v77 = vmul.f32 %v45, -10.0
    %v78 = vmul.f32 %v46, -10.0
    %v79 = vmul.f32 %v47, -10.0
    %v80 = vmul.f32 %v48, -10.0
    %v81 = vmul.f32 %v49, -10.0
    %v82 = vmul.f32 %v50, -10.0
    %v83 = vmul.f32 %v51, -10.0
    %v84 = vmul.f32 %v52, -10.0
    %v85 = vmul.f32 %v53, -10.0
    %v86 = vmul.f32 %v54, -10.0
    %v87 = vmul.f32 %v55, -10.0
    %v88 = vmul.f32 %v56, -10.0
    // While loop
    $region10: #{tpu_custom_call.1} parent=1 // loop_pre_header
      _
    $region11: #{tpu_custom_call.1} parent=1 // loop_header
      %s90 = sphi 0, %s941
      %v91 = vphi 0.0, %v548
      %v92 = vphi 0.0, %v549
      %v93 = vphi 0.0, %v550
      %v94 = vphi 0.0, %v551
      %v95 = vphi 0.0, %v552
      %v96 = vphi 0.0, %v553
      %v97 = vphi 0.0, %v554
      %v98 = vphi 0.0, %v555
      %v99 = vphi 0.0, %v556
      %v100 = vphi 0.0, %v557
      %v101 = vphi 0.0, %v558
      %v102 = vphi 0.0, %v559
      %v103 = vphi 0.0, %v560
      %v104 = vphi 0.0, %v561
      %v105 = vphi 0.0, %v562
      %v106 = vphi 0.0, %v563
      %v107 = vphi 0.0, %v564
      %v108 = vphi 0.0, %v565
      %v109 = vphi 0.0, %v566
      %v110 = vphi 0.0, %v567
      %v111 = vphi 0.0, %v568
      %v112 = vphi 0.0, %v569
      %v113 = vphi 0.0, %v570
      %v114 = vphi 0.0, %v571
      %v115 = vphi 0.0, %v572
      %v116 = vphi 0.0, %v573
      %v117 = vphi 0.0, %v574
      %v118 = vphi 0.0, %v575
      %v119 = vphi 0.0, %v576
      %v120 = vphi 0.0, %v577
      %v121 = vphi 0.0, %v578
      %v122 = vphi 0.0, %v579
      %v123 = vphi 0.0, %v832
      %v124 = vphi 0.0, %v833
      %s125 = sphi inf, %s940
      %p126 = scmp.lt.s32.totalorder %s90, 100
      %p127 = scmp.ge.f32.partialorder %s125, 0.1
      %p128 = pnand %p126, %p127
      %p129 = pneg %p128
    $region12: #{tpu_custom_call.1} parent=1 // loop_header_branch
      %131 = sbr.rel (%p128) target = $region16
    $region13: #{tpu_custom_call.1} parent=1 // loop_body
      %v132 = vadd.f32 %v57, %v91
      %v133 = vadd.f32 %v58, %v92
      %v134 = vadd.f32 %v59, %v93
      %v135 = vadd.f32 %v60, %v94
      %v136 = vadd.f32 %v61, %v95
      %v137 = vadd.f32 %v62, %v96
      %v138 = vadd.f32 %v63, %v97
      %v139 = vadd.f32 %v64, %v98
      %v140 = vadd.f32 %v65, %v99
      %v141 = vadd.f32 %v66, %v100
      %v142 = vadd.f32 %v67, %v101
      %v143 = vadd.f32 %v68, %v102
      %v144 = vadd.f32 %v69, %v103
      %v145 = vadd.f32 %v70, %v104
      %v146 = vadd.f32 %v71, %v105
      %v147 = vadd.f32 %v72, %v106
      %v148 = vadd.f32 %v73, %v107
      %v149 = vadd.f32 %v74, %v108
      %v150 = vadd.f32 %v75, %v109
      %v151 = vadd.f32 %v76, %v110
      %v152 = vadd.f32 %v77, %v111
      %v153 = vadd.f32 %v78, %v112
      %v154 = vadd.f32 %v79, %v113
      %v155 = vadd.f32 %v80, %v114
      %v156 = vadd.f32 %v81, %v115
      %v157 = vadd.f32 %v82, %v116
      %v158 = vadd.f32 %v83, %v117
      %v159 = vadd.f32 %v84, %v118
      %v160 = vadd.f32 %v85, %v119
      %v161 = vadd.f32 %v86, %v120
      %v162 = vadd.f32 %v87, %v121
      %v163 = vadd.f32 %v88, %v122
      %v164 = vadd.f32 %v132, %v123
      %v165 = vadd.f32 %v133, %v123
      %v166 = vadd.f32 %v134, %v123
      %v167 = vadd.f32 %v135, %v123
      %v168 = vadd.f32 %v136, %v123
      %v169 = vadd.f32 %v137, %v123
      %v170 = vadd.f32 %v138, %v123
      %v171 = vadd.f32 %v139, %v123
      %v172 = vadd.f32 %v140, %v123
      %v173 = vadd.f32 %v141, %v123
      %v174 = vadd.f32 %v142, %v123
      %v175 = vadd.f32 %v143, %v123
      %v176 = vadd.f32 %v144, %v123
      %v177 = vadd.f32 %v145, %v123
      %v178 = vadd.f32 %v146, %v123
      %v179 = vadd.f32 %v147, %v123
      %v180 = vadd.f32 %v148, %v124
      %v181 = vadd.f32 %v149, %v124
      %v182 = vadd.f32 %v150, %v124
      %v183 = vadd.f32 %v151, %v124
      %v184 = vadd.f32 %v152, %v124
      %v185 = vadd.f32 %v153, %v124
      %v186 = vadd.f32 %v154, %v124
      %v187 = vadd.f32 %v155, %v124
      %v188 = vadd.f32 %v156, %v124
      %v189 = vadd.f32 %v157, %v124
      %v190 = vadd.f32 %v158, %v124
      %v191 = vadd.f32 %v159, %v124
      %v192 = vadd.f32 %v160, %v124
      %v193 = vadd.f32 %v161, %v124
      %v194 = vadd.f32 %v162, %v124
      %v195 = vadd.f32 %v163, %v124
      %196 = vmax.xlane.f32.xlu0 %v164
      %v197 = vpop.xlane.xlu0 %196
      %198 = vmax.xlane.f32.xlu0 %v165
      %v199 = vpop.xlane.xlu0 %198
      %200 = vmax.xlane.f32.xlu0 %v166
      %v201 = vpop.xlane.xlu0 %200
      %202 = vmax.xlane.f32.xlu0 %v167
      %v203 = vpop.xlane.xlu0 %202
      %204 = vmax.xlane.f32.xlu0 %v168
      %v205 = vpop.xlane.xlu0 %204
      %206 = vmax.xlane.f32.xlu0 %v169
      %v207 = vpop.xlane.xlu0 %206
      %208 = vmax.xlane.f32.xlu0 %v170
      %v209 = vpop.xlane.xlu0 %208
      %210 = vmax.xlane.f32.xlu0 %v171
      %v211 = vpop.xlane.xlu0 %210
      %212 = vmax.xlane.f32.xlu0 %v172
      %v213 = vpop.xlane.xlu0 %212
      %214 = vmax.xlane.f32.xlu0 %v173
      %v215 = vpop.xlane.xlu0 %214
      %216 = vmax.xlane.f32.xlu0 %v174
      %v217 = vpop.xlane.xlu0 %216
      %218 = vmax.xlane.f32.xlu0 %v175
      %v219 = vpop.xlane.xlu0 %218
      %220 = vmax.xlane.f32.xlu0 %v176
      %v221 = vpop.xlane.xlu0 %220
      %222 = vmax.xlane.f32.xlu0 %v177
      %v223 = vpop.xlane.xlu0 %222
      %224 = vmax.xlane.f32.xlu0 %v178
      %v225 = vpop.xlane.xlu0 %224
      %226 = vmax.xlane.f32.xlu0 %v179
      %v227 = vpop.xlane.xlu0 %226
      %228 = vmax.xlane.f32.xlu0 %v180
      %v229 = vpop.xlane.xlu0 %228
      %230 = vmax.xlane.f32.xlu0 %v181
      %v231 = vpop.xlane.xlu0 %230
      %232 = vmax.xlane.f32.xlu0 %v182
      %v233 = vpop.xlane.xlu0 %232
      %234 = vmax.xlane.f32.xlu0 %v183
      %v235 = vpop.xlane.xlu0 %234
      %236 = vmax.xlane.f32.xlu0 %v184
      %v237 = vpop.xlane.xlu0 %236
      %238 = vmax.xlane.f32.xlu0 %v185
      %v239 = vpop.xlane.xlu0 %238
      %240 = vmax.xlane.f32.xlu0 %v186
      %v241 = vpop.xlane.xlu0 %240
      %242 = vmax.xlane.f32.xlu0 %v187
      %v243 = vpop.xlane.xlu0 %242
      %244 = vmax.xlane.f32.xlu0 %v188
      %v245 = vpop.xlane.xlu0 %244
      %246 = vmax.xlane.f32.xlu0 %v189
      %v247 = vpop.xlane.xlu0 %246
      %248 = vmax.xlane.f32.xlu0 %v190
      %v249 = vpop.xlane.xlu0 %248
      %250 = vmax.xlane.f32.xlu0 %v191
      %v251 = vpop.xlane.xlu0 %250
      %252 = vmax.xlane.f32.xlu0 %v192
      %v253 = vpop.xlane.xlu0 %252
      %254 = vmax.xlane.f32.xlu0 %v193
      %v255 = vpop.xlane.xlu0 %254
      %256 = vmax.xlane.f32.xlu0 %v194
      %v257 = vpop.xlane.xlu0 %256
      %258 = vmax.xlane.f32.xlu0 %v195
      %v259 = vpop.xlane.xlu0 %258
      %v260 = vsub.f32 %v164, %v197
      %v261 = vsub.f32 %v165, %v199
      %v262 = vsub.f32 %v166, %v201
      %v263 = vsub.f32 %v167, %v203
      %v264 = vsub.f32 %v168, %v205
      %v265 = vsub.f32 %v169, %v207
      %v266 = vsub.f32 %v170, %v209
      %v267 = vsub.f32 %v171, %v211
      %v268 = vsub.f32 %v172, %v213
      %v269 = vsub.f32 %v173, %v215
      %v270 = vsub.f32 %v174, %v217
      %v271 = vsub.f32 %v175, %v219
      %v272 = vsub.f32 %v176, %v221
      %v273 = vsub.f32 %v177, %v223
      %v274 = vsub.f32 %v178, %v225
      %v275 = vsub.f32 %v179, %v227
      %v276 = vsub.f32 %v180, %v229
      %v277 = vsub.f32 %v181, %v231
      %v278 = vsub.f32 %v182, %v233
      %v279 = vsub.f32 %v183, %v235
      %v280 = vsub.f32 %v184, %v237
      %v281 = vsub.f32 %v185, %v239
      %v282 = vsub.f32 %v186, %v241
      %v283 = vsub.f32 %v187, %v243
      %v284 = vsub.f32 %v188, %v245
      %v285 = vsub.f32 %v189, %v247
      %v286 = vsub.f32 %v190, %v249
      %v287 = vsub.f32 %v191, %v251
      %v288 = vsub.f32 %v192, %v253
      %v289 = vsub.f32 %v193, %v255
      %v290 = vsub.f32 %v194, %v257
      %v291 = vsub.f32 %v195, %v259
      %v292 = vmul.f32 %v260, 1.442695
      %v293 = vpow.pop %v292
      %v294 = vmul.f32 %v261, 1.442695
      %v295 = vpow.pop %v294
      %v296 = vmul.f32 %v262, 1.442695
      %v297 = vpow.pop %v296
      %v298 = vmul.f32 %v263, 1.442695
      %v299 = vpow.pop %v298
      %v300 = vmul.f32 %v264, 1.442695
      %v301 = vpow.pop %v300
      %v302 = vmul.f32 %v265, 1.442695
      %v303 = vpow.pop %v302
      %v304 = vmul.f32 %v266, 1.442695
      %v305 = vpow.pop %v304
      %v306 = vmul.f32 %v267, 1.442695
      %v307 = vpow.pop %v306
      %v308 = vmul.f32 %v268, 1.442695
      %v309 = vpow.pop %v308
      %v310 = vmul.f32 %v269, 1.442695
      %v311 = vpow.pop %v310
      %v312 = vmul.f32 %v270, 1.442695
      %v313 = vpow.pop %v312
      %v314 = vmul.f32 %v271, 1.442695
      %v315 = vpow.pop %v314
      %v316 = vmul.f32 %v272, 1.442695
      %v317 = vpow.pop %v316
      %v318 = vmul.f32 %v273, 1.442695
      %v319 = vpow.pop %v318
      %v320 = vmul.f32 %v274, 1.442695
      %v321 = vpow.pop %v320
      %v322 = vmul.f32 %v275, 1.442695
      %v323 = vpow.pop %v322
      %v324 = vmul.f32 %v276, 1.442695
      %v325 = vpow.pop %v324
      %v326 = vmul.f32 %v277, 1.442695
      %v327 = vpow.pop %v326
      %v328 = vmul.f32 %v278, 1.442695
      %v329 = vpow.pop %v328
      %v330 = vmul.f32 %v279, 1.442695
      %v331 = vpow.pop %v330
      %v332 = vmul.f32 %v280, 1.442695
      %v333 = vpow.pop %v332
      %v334 = vmul.f32 %v281, 1.442695
      %v335 = vpow.pop %v334
      %v336 = vmul.f32 %v282, 1.442695
      %v337 = vpow.pop %v336
      %v338 = vmul.f32 %v283, 1.442695
      %v339 = vpow.pop %v338
      %v340 = vmul.f32 %v284, 1.442695
      %v341 = vpow.pop %v340
      %v342 = vmul.f32 %v285, 1.442695
      %v343 = vpow.pop %v342
      %v344 = vmul.f32 %v286, 1.442695
      %v345 = vpow.pop %v344
      %v346 = vmul.f32 %v287, 1.442695
      %v347 = vpow.pop %v346
      %v348 = vmul.f32 %v288, 1.442695
      %v349 = vpow.pop %v348
      %v350 = vmul.f32 %v289, 1.442695
      %v351 = vpow.pop %v350
      %v352 = vmul.f32 %v290, 1.442695
      %v353 = vpow.pop %v352
      %v354 = vmul.f32 %v291, 1.442695
      %v355 = vpow.pop %v354
      %356 = vadd.xlane.f32.xlu0 %v293
      %v357 = vpop.xlane.xlu0 %356
      %358 = vadd.xlane.f32.xlu0 %v295
      %v359 = vpop.xlane.xlu0 %358
      %360 = vadd.xlane.f32.xlu0 %v297
      %v361 = vpop.xlane.xlu0 %360
      %362 = vadd.xlane.f32.xlu0 %v299
      %v363 = vpop.xlane.xlu0 %362
      %364 = vadd.xlane.f32.xlu0 %v301
      %v365 = vpop.xlane.xlu0 %364
      %366 = vadd.xlane.f32.xlu0 %v303
      %v367 = vpop.xlane.xlu0 %366
      %368 = vadd.xlane.f32.xlu0 %v305
      %v369 = vpop.xlane.xlu0 %368
      %370 = vadd.xlane.f32.xlu0 %v307
      %v371 = vpop.xlane.xlu0 %370
      %372 = vadd.xlane.f32.xlu0 %v309
      %v373 = vpop.xlane.xlu0 %372
      %374 = vadd.xlane.f32.xlu0 %v311
      %v375 = vpop.xlane.xlu0 %374
      %376 = vadd.xlane.f32.xlu0 %v313
      %v377 = vpop.xlane.xlu0 %376
      %378 = vadd.xlane.f32.xlu0 %v315
      %v379 = vpop.xlane.xlu0 %378
      %380 = vadd.xlane.f32.xlu0 %v317
      %v381 = vpop.xlane.xlu0 %380
      %382 = vadd.xlane.f32.xlu0 %v319
      %v383 = vpop.xlane.xlu0 %382
      %384 = vadd.xlane.f32.xlu0 %v321
      %v385 = vpop.xlane.xlu0 %384
      %386 = vadd.xlane.f32.xlu0 %v323
      %v387 = vpop.xlane.xlu0 %386
      %388 = vadd.xlane.f32.xlu0 %v325
      %v389 = vpop.xlane.xlu0 %388
      %390 = vadd.xlane.f32.xlu0 %v327
      %v391 = vpop.xlane.xlu0 %390
      %392 = vadd.xlane.f32.xlu0 %v329
      %v393 = vpop.xlane.xlu0 %392
      %394 = vadd.xlane.f32.xlu0 %v331
      %v395 = vpop.xlane.xlu0 %394
      %396 = vadd.xlane.f32.xlu0 %v333
      %v397 = vpop.xlane.xlu0 %396
      %398 = vadd.xlane.f32.xlu0 %v335
      %v399 = vpop.xlane.xlu0 %398
      %400 = vadd.xlane.f32.xlu0 %v337
      %v401 = vpop.xlane.xlu0 %400
      %402 = vadd.xlane.f32.xlu0 %v339
      %v403 = vpop.xlane.xlu0 %402
      %404 = vadd.xlane.f32.xlu0 %v341
      %v405 = vpop.xlane.xlu0 %404
      %406 = vadd.xlane.f32.xlu0 %v343
      %v407 = vpop.xlane.xlu0 %406
      %408 = vadd.xlane.f32.xlu0 %v345
      %v409 = vpop.xlane.xlu0 %408
      %410 = vadd.xlane.f32.xlu0 %v347
      %v411 = vpop.xlane.xlu0 %410
      %412 = vadd.xlane.f32.xlu0 %v349
      %v413 = vpop.xlane.xlu0 %412
      %414 = vadd.xlane.f32.xlu0 %v351
      %v415 = vpop.xlane.xlu0 %414
      %416 = vadd.xlane.f32.xlu0 %v353
      %v417 = vpop.xlane.xlu0 %416
      %418 = vadd.xlane.f32.xlu0 %v355
      %v419 = vpop.xlane.xlu0 %418
      %v420 = vlog2.pop %v357
      %v421 = vmul.f32 %v420, 0.6931472
      %v422 = vlog2.pop %v359
      %v423 = vmul.f32 %v422, 0.6931472
      %v424 = vlog2.pop %v361
      %v425 = vmul.f32 %v424, 0.6931472
      %v426 = vlog2.pop %v363
      %v427 = vmul.f32 %v426, 0.6931472
      %v428 = vlog2.pop %v365
      %v429 = vmul.f32 %v428, 0.6931472
      %v430 = vlog2.pop %v367
      %v431 = vmul.f32 %v430, 0.6931472
      %v432 = vlog2.pop %v369
      %v433 = vmul.f32 %v432, 0.6931472
      %v434 = vlog2.pop %v371
      %v435 = vmul.f32 %v434, 0.6931472
      %v436 = vlog2.pop %v373
      %v437 = vmul.f32 %v436, 0.6931472
      %v438 = vlog2.pop %v375
      %v439 = vmul.f32 %v438, 0.6931472
      %v440 = vlog2.pop %v377
      %v441 = vmul.f32 %v440, 0.6931472
      %v442 = vlog2.pop %v379
      %v443 = vmul.f32 %v442, 0.6931472
      %v444 = vlog2.pop %v381
      %v445 = vmul.f32 %v444, 0.6931472
      %v446 = vlog2.pop %v383
      %v447 = vmul.f32 %v446, 0.6931472
      %v448 = vlog2.pop %v385
      %v449 = vmul.f32 %v448, 0.6931472
      %v450 = vlog2.pop %v387
      %v451 = vmul.f32 %v450, 0.6931472
      %v452 = vlog2.pop %v389
      %v453 = vmul.f32 %v452, 0.6931472
      %v454 = vlog2.pop %v391
      %v455 = vmul.f32 %v454, 0.6931472
      %v456 = vlog2.pop %v393
      %v457 = vmul.f32 %v456, 0.6931472
      %v458 = vlog2.pop %v395
      %v459 = vmul.f32 %v458, 0.6931472
      %v460 = vlog2.pop %v397
      %v461 = vmul.f32 %v460, 0.6931472
      %v462 = vlog2.pop %v399
      %v463 = vmul.f32 %v462, 0.6931472
      %v464 = vlog2.pop %v401
      %v465 = vmul.f32 %v464, 0.6931472
      %v466 = vlog2.pop %v403
      %v467 = vmul.f32 %v466, 0.6931472
      %v468 = vlog2.pop %v405
      %v469 = vmul.f32 %v468, 0.6931472
      %v470 = vlog2.pop %v407
      %v471 = vmul.f32 %v470, 0.6931472
      %v472 = vlog2.pop %v409
      %v473 = vmul.f32 %v472, 0.6931472
      %v474 = vlog2.pop %v411
      %v475 = vmul.f32 %v474, 0.6931472
      %v476 = vlog2.pop %v413
      %v477 = vmul.f32 %v476, 0.6931472
      %v478 = vlog2.pop %v415
      %v479 = vmul.f32 %v478, 0.6931472
      %v480 = vlog2.pop %v417
      %v481 = vmul.f32 %v480, 0.6931472
      %v482 = vlog2.pop %v419
      %v483 = vmul.f32 %v482, 0.6931472
      %v484 = vadd.f32 %v197, %v421
      %v485 = vadd.f32 %v199, %v423
      %v486 = vadd.f32 %v201, %v425
      %v487 = vadd.f32 %v203, %v427
      %v488 = vadd.f32 %v205, %v429
      %v489 = vadd.f32 %v207, %v431
      %v490 = vadd.f32 %v209, %v433
      %v491 = vadd.f32 %v211, %v435
      %v492 = vadd.f32 %v213, %v437
      %v493 = vadd.f32 %v215, %v439
      %v494 = vadd.f32 %v217, %v441
      %v495 = vadd.f32 %v219, %v443
      %v496 = vadd.f32 %v221, %v445
      %v497 = vadd.f32 %v223, %v447
      %v498 = vadd.f32 %v225, %v449
      %v499 = vadd.f32 %v227, %v451
      %v500 = vadd.f32 %v229, %v453
      %v501 = vadd.f32 %v231, %v455
      %v502 = vadd.f32 %v233, %v457
      %v503 = vadd.f32 %v235, %v459
      %v504 = vadd.f32 %v237, %v461
      %v505 = vadd.f32 %v239, %v463
      %v506 = vadd.f32 %v241, %v465
      %v507 = vadd.f32 %v243, %v467
      %v508 = vadd.f32 %v245, %v469
      %v509 = vadd.f32 %v247, %v471
      %v510 = vadd.f32 %v249, %v473
      %v511 = vadd.f32 %v251, %v475
      %v512 = vadd.f32 %v253, %v477
      %v513 = vadd.f32 %v255, %v479
      %v514 = vadd.f32 %v257, %v481
      %v515 = vadd.f32 %v259, %v483
      %v516 = vsub.f32 -4.852029, %v484
      %v517 = vsub.f32 -4.852029, %v485
      %v518 = vsub.f32 -4.852029, %v486
      %v519 = vsub.f32 -4.852029, %v487
      %v520 = vsub.f32 -4.852029, %v488
      %v521 = vsub.f32 -4.852029, %v489
      %v522 = vsub.f32 -4.852029, %v490
      %v523 = vsub.f32 -4.852029, %v491
      %v524 = vsub.f32 -4.852029, %v492
      %v525 = vsub.f32 -4.852029, %v493
      %v526 = vsub.f32 -4.852029, %v494
      %v527 = vsub.f32 -4.852029, %v495
      %v528 = vsub.f32 -4.852029, %v496
      %v529 = vsub.f32 -4.852029, %v497
      %v530 = vsub.f32 -4.852029, %v498
      %v531 = vsub.f32 -4.852029, %v499
      %v532 = vsub.f32 -4.852029, %v500
      %v533 = vsub.f32 -4.852029, %v501
      %v534 = vsub.f32 -4.852029, %v502
      %v535 = vsub.f32 -4.852029, %v503
      %v536 = vsub.f32 -4.852029, %v504
      %v537 = vsub.f32 -4.852029, %v505
      %v538 = vsub.f32 -4.852029, %v506
      %v539 = vsub.f32 -4.852029, %v507
      %v540 = vsub.f32 -4.852029, %v508
      %v541 = vsub.f32 -4.852029, %v509
      %v542 = vsub.f32 -4.852029, %v510
      %v543 = vsub.f32 -4.852029, %v511
      %v544 = vsub.f32 -4.852029, %v512
      %v545 = vsub.f32 -4.852029, %v513
      %v546 = vsub.f32 -4.852029, %v514
      %v547 = vsub.f32 -4.852029, %v515
      %v548 = vadd.f32 %v91, %v516
      %v549 = vadd.f32 %v92, %v517
      %v550 = vadd.f32 %v93, %v518
      %v551 = vadd.f32 %v94, %v519
      %v552 = vadd.f32 %v95, %v520
      %v553 = vadd.f32 %v96, %v521
      %v554 = vadd.f32 %v97, %v522
      %v555 = vadd.f32 %v98, %v523
      %v556 = vadd.f32 %v99, %v524
      %v557 = vadd.f32 %v100, %v525
      %v558 = vadd.f32 %v101, %v526
      %v559 = vadd.f32 %v102, %v527
      %v560 = vadd.f32 %v103, %v528
      %v561 = vadd.f32 %v104, %v529
      %v562 = vadd.f32 %v105, %v530
      %v563 = vadd.f32 %v106, %v531
      %v564 = vadd.f32 %v107, %v532
      %v565 = vadd.f32 %v108, %v533
      %v566 = vadd.f32 %v109, %v534
      %v567 = vadd.f32 %v110, %v535
      %v568 = vadd.f32 %v111, %v536
      %v569 = vadd.f32 %v112, %v537
      %v570 = vadd.f32 %v113, %v538
      %v571 = vadd.f32 %v114, %v539
      %v572 = vadd.f32 %v115, %v540
      %v573 = vadd.f32 %v116, %v541
      %v574 = vadd.f32 %v117, %v542
      %v575 = vadd.f32 %v118, %v543
      %v576 = vadd.f32 %v119, %v544
      %v577 = vadd.f32 %v120, %v545
      %v578 = vadd.f32 %v121, %v546
      %v579 = vadd.f32 %v122, %v547
      %v580 = vadd.f32 %v57, %v548
      %v581 = vadd.f32 %v58, %v549
      %v582 = vadd.f32 %v59, %v550
      %v583 = vadd.f32 %v60, %v551
      %v584 = vadd.f32 %v61, %v552
      %v585 = vadd.f32 %v62, %v553
      %v586 = vadd.f32 %v63, %v554
      %v587 = vadd.f32 %v64, %v555
      %v588 = vadd.f32 %v65, %v556
      %v589 = vadd.f32 %v66, %v557
      %v590 = vadd.f32 %v67, %v558
      %v591 = vadd.f32 %v68, %v559
      %v592 = vadd.f32 %v69, %v560
      %v593 = vadd.f32 %v70, %v561
      %v594 = vadd.f32 %v71, %v562
      %v595 = vadd.f32 %v72, %v563
      %v596 = vadd.f32 %v73, %v564
      %v597 = vadd.f32 %v74, %v565
      %v598 = vadd.f32 %v75, %v566
      %v599 = vadd.f32 %v76, %v567
      %v600 = vadd.f32 %v77, %v568
      %v601 = vadd.f32 %v78, %v569
      %v602 = vadd.f32 %v79, %v570
      %v603 = vadd.f32 %v80, %v571
      %v604 = vadd.f32 %v81, %v572
      %v605 = vadd.f32 %v82, %v573
      %v606 = vadd.f32 %v83, %v574
      %v607 = vadd.f32 %v84, %v575
      %v608 = vadd.f32 %v85, %v576
      %v609 = vadd.f32 %v86, %v577
      %v610 = vadd.f32 %v87, %v578
      %v611 = vadd.f32 %v88, %v579
      %v612 = vadd.f32 %v580, %v123
      %v613 = vadd.f32 %v581, %v123
      %v614 = vadd.f32 %v582, %v123
      %v615 = vadd.f32 %v583, %v123
      %v616 = vadd.f32 %v584, %v123
      %v617 = vadd.f32 %v585, %v123
      %v618 = vadd.f32 %v586, %v123
      %v619 = vadd.f32 %v587, %v123
      %v620 = vadd.f32 %v588, %v123
      %v621 = vadd.f32 %v589, %v123
      %v622 = vadd.f32 %v590, %v123
      %v623 = vadd.f32 %v591, %v123
      %v624 = vadd.f32 %v592, %v123
      %v625 = vadd.f32 %v593, %v123
      %v626 = vadd.f32 %v594, %v123
      %v627 = vadd.f32 %v595, %v123
      %v628 = vadd.f32 %v596, %v124
      %v629 = vadd.f32 %v597, %v124
      %v630 = vadd.f32 %v598, %v124
      %v631 = vadd.f32 %v599, %v124
      %v632 = vadd.f32 %v600, %v124
      %v633 = vadd.f32 %v601, %v124
      %v634 = vadd.f32 %v602, %v124
      %v635 = vadd.f32 %v603, %v124
      %v636 = vadd.f32 %v604, %v124
      %v637 = vadd.f32 %v605, %v124
      %v638 = vadd.f32 %v606, %v124
      %v639 = vadd.f32 %v607, %v124
      %v640 = vadd.f32 %v608, %v124
      %v641 = vadd.f32 %v609, %v124
      %v642 = vadd.f32 %v610, %v124
      %v643 = vadd.f32 %v611, %v124
      %v644 = vmax.f32 %v612, %v614
      %v645 = vmax.f32 %v613, %v615
      %v646 = vmax.f32 %v644, %v616
      %v647 = vmax.f32 %v645, %v617
      %v648 = vmax.f32 %v646, %v618
      %v649 = vmax.f32 %v647, %v619
      %v650 = vmax.f32 %v648, %v620
      %v651 = vmax.f32 %v649, %v621
      %v652 = vmax.f32 %v650, %v622
      %v653 = vmax.f32 %v651, %v623
      %v654 = vmax.f32 %v652, %v624
      %v655 = vmax.f32 %v653, %v625
      %v656 = vmax.f32 %v654, %v626
      %v657 = vmax.f32 %v655, %v627
      %v658 = vmax.f32 %v656, %v657
      %v659 = vrot.slane %v658, 4
      %v660 = vmax.f32 %v658, %v659
      %v661 = vrot.slane %v660, 2
      %v662 = vmax.f32 %v660, %v661
      %v663 = vrot.slane %v662, 1
      %v664 = vmax.f32 %v662, %v663
      %v665 = vmax.f32 %v628, %v630
      %v666 = vmax.f32 %v629, %v631
      %v667 = vmax.f32 %v665, %v632
      %v668 = vmax.f32 %v666, %v633
      %v669 = vmax.f32 %v667, %v634
      %v670 = vmax.f32 %v668, %v635
      %v671 = vmax.f32 %v669, %v636
      %v672 = vmax.f32 %v670, %v637
      %v673 = vmax.f32 %v671, %v638
      %v674 = vmax.f32 %v672, %v639
      %v675 = vmax.f32 %v673, %v640
      %v676 = vmax.f32 %v674, %v641
      %v677 = vmax.f32 %v675, %v642
      %v678 = vmax.f32 %v676, %v643
      %v679 = vmax.f32 %v677, %v678
      %v680 = vrot.slane %v679, 4
      %v681 = vmax.f32 %v679, %v680
      %v682 = vrot.slane %v681, 2
      %v683 = vmax.f32 %v681, %v682
      %v684 = vrot.slane %v683, 1
      %v685 = vmax.f32 %v683, %v684
      %v686 = vsub.f32 %v612, %v664
      %v687 = vsub.f32 %v613, %v664
      %v688 = vsub.f32 %v614, %v664
      %v689 = vsub.f32 %v615, %v664
      %v690 = vsub.f32 %v616, %v664
      %v691 = vsub.f32 %v617, %v664
      %v692 = vsub.f32 %v618, %v664
      %v693 = vsub.f32 %v619, %v664
      %v694 = vsub.f32 %v620, %v664
      %v695 = vsub.f32 %v621, %v664
      %v696 = vsub.f32 %v622, %v664
      %v697 = vsub.f32 %v623, %v664
      %v698 = vsub.f32 %v624, %v664
      %v699 = vsub.f32 %v625, %v664
      %v700 = vsub.f32 %v626, %v664
      %v701 = vsub.f32 %v627, %v664
      %v702 = vsub.f32 %v628, %v685
      %v703 = vsub.f32 %v629, %v685
      %v704 = vsub.f32 %v630, %v685
      %v705 = vsub.f32 %v631, %v685
      %v706 = vsub.f32 %v632, %v685
      %v707 = vsub.f32 %v633, %v685
      %v708 = vsub.f32 %v634, %v685
      %v709 = vsub.f32 %v635, %v685
      %v710 = vsub.f32 %v636, %v685
      %v711 = vsub.f32 %v637, %v685
      %v712 = vsub.f32 %v638, %v685
      %v713 = vsub.f32 %v639, %v685
      %v714 = vsub.f32 %v640, %v685
      %v715 = vsub.f32 %v641, %v685
      %v716 = vsub.f32 %v642, %v685
      %v717 = vsub.f32 %v643, %v685
      %v718 = vmul.f32 %v686, 1.442695
      %v719 = vpow.pop %v718
      %v720 = vmul.f32 %v687, 1.442695
      %v721 = vpow.pop %v720
      %v722 = vmul.f32 %v688, 1.442695
      %v723 = vpow.pop %v722
      %v724 = vmul.f32 %v689, 1.442695
      %v725 = vpow.pop %v724
      %v726 = vmul.f32 %v690, 1.442695
      %v727 = vpow.pop %v726
      %v728 = vmul.f32 %v691, 1.442695
      %v729 = vpow.pop %v728
      %v730 = vmul.f32 %v692, 1.442695
      %v731 = vpow.pop %v730
      %v732 = vmul.f32 %v693, 1.442695
      %v733 = vpow.pop %v732
      %v734 = vmul.f32 %v694, 1.442695
      %v735 = vpow.pop %v734
      %v736 = vmul.f32 %v695, 1.442695
      %v737 = vpow.pop %v736
      %v738 = vmul.f32 %v696, 1.442695
      %v739 = vpow.pop %v738
      %v740 = vmul.f32 %v697, 1.442695
      %v741 = vpow.pop %v740
      %v742 = vmul.f32 %v698, 1.442695
      %v743 = vpow.pop %v742
      %v744 = vmul.f32 %v699, 1.442695
      %v745 = vpow.pop %v744
      %v746 = vmul.f32 %v700, 1.442695
      %v747 = vpow.pop %v746
      %v748 = vmul.f32 %v701, 1.442695
      %v749 = vpow.pop %v748
      %v750 = vmul.f32 %v702, 1.442695
      %v751 = vpow.pop %v750
      %v752 = vmul.f32 %v703, 1.442695
      %v753 = vpow.pop %v752
      %v754 = vmul.f32 %v704, 1.442695
      %v755 = vpow.pop %v754
      %v756 = vmul.f32 %v705, 1.442695
      %v757 = vpow.pop %v756
      %v758 = vmul.f32 %v706, 1.442695
      %v759 = vpow.pop %v758
      %v760 = vmul.f32 %v707, 1.442695
      %v761 = vpow.pop %v760
      %v762 = vmul.f32 %v708, 1.442695
      %v763 = vpow.pop %v762
      %v764 = vmul.f32 %v709, 1.442695
      %v765 = vpow.pop %v764
      %v766 = vmul.f32 %v710, 1.442695
      %v767 = vpow.pop %v766
      %v768 = vmul.f32 %v711, 1.442695
      %v769 = vpow.pop %v768
      %v770 = vmul.f32 %v712, 1.442695
      %v771 = vpow.pop %v770
      %v772 = vmul.f32 %v713, 1.442695
      %v773 = vpow.pop %v772
      %v774 = vmul.f32 %v714, 1.442695
      %v775 = vpow.pop %v774
      %v776 = vmul.f32 %v715, 1.442695
      %v777 = vpow.pop %v776
      %v778 = vmul.f32 %v716, 1.442695
      %v779 = vpow.pop %v778
      %v780 = vmul.f32 %v717, 1.442695
      %v781 = vpow.pop %v780
      %v782 = vadd.f32 %v719, %v721
      %v783 = vadd.f32 %v782, %v723
      %v784 = vadd.f32 %v783, %v725
      %v785 = vadd.f32 %v784, %v727
      %v786 = vadd.f32 %v785, %v729
      %v787 = vadd.f32 %v786, %v731
      %v788 = vadd.f32 %v787, %v733
      %v789 = vadd.f32 %v788, %v735
      %v790 = vadd.f32 %v789, %v737
      %v791 = vadd.f32 %v790, %v739
      %v792 = vadd.f32 %v791, %v741
      %v793 = vadd.f32 %v792, %v743
      %v794 = vadd.f32 %v793, %v745
      %v795 = vadd.f32 %v794, %v747
      %v796 = vadd.f32 %v795, %v749
      %v797 = vrot.slane %v796, 4
      %v798 = vadd.f32 %v796, %v797
      %v799 = vrot.slane %v798, 2
      %v800 = vadd.f32 %v798, %v799
      %v801 = vrot.slane %v800, 1
      %v802 = vadd.f32 %v800, %v801
      %v803 = vadd.f32 %v751, %v753
      %v804 = vadd.f32 %v803, %v755
      %v805 = vadd.f32 %v804, %v757
      %v806 = vadd.f32 %v805, %v759
      %v807 = vadd.f32 %v806, %v761
      %v808 = vadd.f32 %v807, %v763
      %v809 = vadd.f32 %v808, %v765
      %v810 = vadd.f32 %v809, %v767
      %v811 = vadd.f32 %v810, %v769
      %v812 = vadd.f32 %v811, %v771
      %v813 = vadd.f32 %v812, %v773
      %v814 = vadd.f32 %v813, %v775
      %v815 = vadd.f32 %v814, %v777
      %v816 = vadd.f32 %v815, %v779
      %v817 = vadd.f32 %v816, %v781
      %v818 = vrot.slane %v817, 4
      %v819 = vadd.f32 %v817, %v818
      %v820 = vrot.slane %v819, 2
      %v821 = vadd.f32 %v819, %v820
      %v822 = vrot.slane %v821, 1
      %v823 = vadd.f32 %v821, %v822
      %v824 = vlog2.pop %v802
      %v825 = vmul.f32 %v824, 0.6931472
      %v826 = vlog2.pop %v823
      %v827 = vmul.f32 %v826, 0.6931472
      %v828 = vadd.f32 %v664, %v825
      %v829 = vadd.f32 %v685, %v827
      %v830 = vsub.f32 -4.852029, %v828
      %v831 = vsub.f32 -4.852029, %v829
      %v832 = vadd.f32 %v123, %v830
      %v833 = vadd.f32 %v124, %v831
      %v834 = vand.u32 2147483647, %v516
      %v835 = vand.u32 2147483647, %v517
      %v836 = vand.u32 2147483647, %v518
      %v837 = vand.u32 2147483647, %v519
      %v838 = vand.u32 2147483647, %v520
      %v839 = vand.u32 2147483647, %v521
      %v840 = vand.u32 2147483647, %v522
      %v841 = vand.u32 2147483647, %v523
      %v842 = vand.u32 2147483647, %v524
      %v843 = vand.u32 2147483647, %v525
      %v844 = vand.u32 2147483647, %v526
      %v845 = vand.u32 2147483647, %v527
      %v846 = vand.u32 2147483647, %v528
      %v847 = vand.u32 2147483647, %v529
      %v848 = vand.u32 2147483647, %v530
      %v849 = vand.u32 2147483647, %v531
      %v850 = vand.u32 2147483647, %v532
      %v851 = vand.u32 2147483647, %v533
      %v852 = vand.u32 2147483647, %v534
      %v853 = vand.u32 2147483647, %v535
      %v854 = vand.u32 2147483647, %v536
      %v855 = vand.u32 2147483647, %v537
      %v856 = vand.u32 2147483647, %v538
      %v857 = vand.u32 2147483647, %v539
      %v858 = vand.u32 2147483647, %v540
      %v859 = vand.u32 2147483647, %v541
      %v860 = vand.u32 2147483647, %v542
      %v861 = vand.u32 2147483647, %v543
      %v862 = vand.u32 2147483647, %v544
      %v863 = vand.u32 2147483647, %v545
      %v864 = vand.u32 2147483647, %v546
      %v865 = vand.u32 2147483647, %v547
      %vm866 = vcmask 7168
      %v867 = vsel %vm866, %v834, 0.0
      %v868 = vsel %vm866, %v835, 0.0
      %v869 = vadd.f32 %v867, %v868
      %v870 = vsel %vm866, %v836, 0.0
      %v871 = vadd.f32 %v869, %v870
      %v872 = vsel %vm866, %v837, 0.0
      %v873 = vadd.f32 %v871, %v872
      %v874 = vsel %vm866, %v838, 0.0
      %v875 = vadd.f32 %v873, %v874
      %v876 = vsel %vm866, %v839, 0.0
      %v877 = vadd.f32 %v875, %v876
      %v878 = vsel %vm866, %v840, 0.0
      %v879 = vadd.f32 %v877, %v878
      %v880 = vsel %vm866, %v841, 0.0
      %v881 = vadd.f32 %v879, %v880
      %v882 = vsel %vm866, %v842, 0.0
      %v883 = vadd.f32 %v881, %v882
      %v884 = vsel %vm866, %v843, 0.0
      %v885 = vadd.f32 %v883, %v884
      %v886 = vsel %vm866, %v844, 0.0
      %v887 = vadd.f32 %v885, %v886
      %v888 = vsel %vm866, %v845, 0.0
      %v889 = vadd.f32 %v887, %v888
      %v890 = vsel %vm866, %v846, 0.0
      %v891 = vadd.f32 %v889, %v890
      %v892 = vsel %vm866, %v847, 0.0
      %v893 = vadd.f32 %v891, %v892
      %v894 = vsel %vm866, %v848, 0.0
      %v895 = vadd.f32 %v893, %v894
      %v896 = vsel %vm866, %v849, 0.0
      %v897 = vadd.f32 %v895, %v896
      %v898 = vsel %vm866, %v850, 0.0
      %v899 = vadd.f32 %v897, %v898
      %v900 = vsel %vm866, %v851, 0.0
      %v901 = vadd.f32 %v899, %v900
      %v902 = vsel %vm866, %v852, 0.0
      %v903 = vadd.f32 %v901, %v902
      %v904 = vsel %vm866, %v853, 0.0
      %v905 = vadd.f32 %v903, %v904
      %v906 = vsel %vm866, %v854, 0.0
      %v907 = vadd.f32 %v905, %v906
      %v908 = vsel %vm866, %v855, 0.0
      %v909 = vadd.f32 %v907, %v908
      %v910 = vsel %vm866, %v856, 0.0
      %v911 = vadd.f32 %v909, %v910
      %v912 = vsel %vm866, %v857, 0.0
      %v913 = vadd.f32 %v911, %v912
      %v914 = vsel %vm866, %v858, 0.0
      %v915 = vadd.f32 %v913, %v914
      %v916 = vsel %vm866, %v859, 0.0
      %v917 = vadd.f32 %v915, %v916
      %v918 = vsel %vm866, %v860, 0.0
      %v919 = vadd.f32 %v917, %v918
      %v920 = vsel %vm866, %v861, 0.0
      %v921 = vadd.f32 %v919, %v920
      %v922 = vsel %vm866, %v862, 0.0
      %v923 = vadd.f32 %v921, %v922
      %v924 = vsel %vm866, %v863, 0.0
      %v925 = vadd.f32 %v923, %v924
      %v926 = vsel %vm866, %v864, 0.0
      %v927 = vadd.f32 %v925, %v926
      %v928 = vsel %vm866, %v865, 0.0
      %v929 = vadd.f32 %v927, %v928
      %930 = vadd.xlane.f32.xlu0 %v929
      %v931 = vpop.xlane.xlu0 %930
      %v932 = vrot.slane %v931, 4
      %v933 = vadd.f32 %v931, %v932
      %v934 = vrot.slane %v933, 2
      %v935 = vadd.f32 %v933, %v934
      %v936 = vrot.slane %v935, 1
      %v937 = vadd.f32 %v935, %v936
      %s938 = vtos %v937
      %s939 = smul.f32 %s938, 0.1
      %s940 = smul.f32 %s939, 0.5
      %s941 = sadd.s32 %s90, 1
    $region14: #{tpu_custom_call.1} parent=1 // loop_footer
      _
    $region15: #{tpu_custom_call.1} parent=1 // loop_footer_branch
      %89 = sbr.rel target = $region11
    $region16: #{tpu_custom_call.1} parent=1 // loop_exit
      _
    %v942 = vadd.f32 %v57, %v91
    %v943 = vadd.f32 %v58, %v92
    %v944 = vadd.f32 %v59, %v93
    %v945 = vadd.f32 %v60, %v94
    %v946 = vadd.f32 %v61, %v95
    %v947 = vadd.f32 %v62, %v96
    %v948 = vadd.f32 %v63, %v97
    %v949 = vadd.f32 %v64, %v98
    %v950 = vadd.f32 %v65, %v99
    %v951 = vadd.f32 %v66, %v100
    %v952 = vadd.f32 %v67, %v101
    %v953 = vadd.f32 %v68, %v102
    %v954 = vadd.f32 %v69, %v103
    %v955 = vadd.f32 %v70, %v104
    %v956 = vadd.f32 %v71, %v105
    %v957 = vadd.f32 %v72, %v106
    %v958 = vadd.f32 %v73, %v107
    %v959 = vadd.f32 %v74, %v108
    %v960 = vadd.f32 %v75, %v109
    %v961 = vadd.f32 %v76, %v110
    %v962 = vadd.f32 %v77, %v111
    %v963 = vadd.f32 %v78, %v112
    %v964 = vadd.f32 %v79, %v113
    %v965 = vadd.f32 %v80, %v114
    %v966 = vadd.f32 %v81, %v115
    %v967 = vadd.f32 %v82, %v116
    %v968 = vadd.f32 %v83, %v117
    %v969 = vadd.f32 %v84, %v118
    %v970 = vadd.f32 %v85, %v119
    %v971 = vadd.f32 %v86, %v120
    %v972 = vadd.f32 %v87, %v121
    %v973 = vadd.f32 %v88, %v122
    %v974 = vadd.f32 %v942, %v123
    %v975 = vadd.f32 %v943, %v123
    %v976 = vadd.f32 %v944, %v123
    %v977 = vadd.f32 %v945, %v123
    %v978 = vadd.f32 %v946, %v123
    %v979 = vadd.f32 %v947, %v123
    %v980 = vadd.f32 %v948, %v123
    %v981 = vadd.f32 %v949, %v123
    %v982 = vadd.f32 %v950, %v123
    %v983 = vadd.f32 %v951, %v123
    %v984 = vadd.f32 %v952, %v123
    %v985 = vadd.f32 %v953, %v123
    %v986 = vadd.f32 %v954, %v123
    %v987 = vadd.f32 %v955, %v123
    %v988 = vadd.f32 %v956, %v123
    %v989 = vadd.f32 %v957, %v123
    %v990 = vadd.f32 %v958, %v124
    %v991 = vadd.f32 %v959, %v124
    %v992 = vadd.f32 %v960, %v124
    %v993 = vadd.f32 %v961, %v124
    %v994 = vadd.f32 %v962, %v124
    %v995 = vadd.f32 %v963, %v124
    %v996 = vadd.f32 %v964, %v124
    %v997 = vadd.f32 %v965, %v124
    %v998 = vadd.f32 %v966, %v124
    %v999 = vadd.f32 %v967, %v124
    %v1000 = vadd.f32 %v968, %v124
    %v1001 = vadd.f32 %v969, %v124
    %v1002 = vadd.f32 %v970, %v124
    %v1003 = vadd.f32 %v971, %v124
    %v1004 = vadd.f32 %v972, %v124
    %v1005 = vadd.f32 %v973, %v124
    %v1006 = vmul.f32 %v974, 1.442695
    %v1007 = vpow.pop %v1006
    %v1008 = vmul.f32 %v975, 1.442695
    %v1009 = vpow.pop %v1008
    %v1010 = vmul.f32 %v976, 1.442695
    %v1011 = vpow.pop %v1010
    %v1012 = vmul.f32 %v977, 1.442695
    %v1013 = vpow.pop %v1012
    %v1014 = vmul.f32 %v978, 1.442695
    %v1015 = vpow.pop %v1014
    %v1016 = vmul.f32 %v979, 1.442695
    %v1017 = vpow.pop %v1016
    %v1018 = vmul.f32 %v980, 1.442695
    %v1019 = vpow.pop %v1018
    %v1020 = vmul.f32 %v981, 1.442695
    %v1021 = vpow.pop %v1020
    %v1022 = vmul.f32 %v982, 1.442695
    %v1023 = vpow.pop %v1022
    %v1024 = vmul.f32 %v983, 1.442695
    %v1025 = vpow.pop %v1024
    %v1026 = vmul.f32 %v984, 1.442695
    %v1027 = vpow.pop %v1026
    %v1028 = vmul.f32 %v985, 1.442695
    %v1029 = vpow.pop %v1028
    %v1030 = vmul.f32 %v986, 1.442695
    %v1031 = vpow.pop %v1030
    %v1032 = vmul.f32 %v987, 1.442695
    %v1033 = vpow.pop %v1032
    %v1034 = vmul.f32 %v988, 1.442695
    %v1035 = vpow.pop %v1034
    %v1036 = vmul.f32 %v989, 1.442695
    %v1037 = vpow.pop %v1036
    %v1038 = vmul.f32 %v990, 1.442695
    %v1039 = vpow.pop %v1038
    %v1040 = vmul.f32 %v991, 1.442695
    %v1041 = vpow.pop %v1040
    %v1042 = vmul.f32 %v992, 1.442695
    %v1043 = vpow.pop %v1042
    %v1044 = vmul.f32 %v993, 1.442695
    %v1045 = vpow.pop %v1044
    %v1046 = vmul.f32 %v994, 1.442695
    %v1047 = vpow.pop %v1046
    %v1048 = vmul.f32 %v995, 1.442695
    %v1049 = vpow.pop %v1048
    %v1050 = vmul.f32 %v996, 1.442695
    %v1051 = vpow.pop %v1050
    %v1052 = vmul.f32 %v997, 1.442695
    %v1053 = vpow.pop %v1052
    %v1054 = vmul.f32 %v998, 1.442695
    %v1055 = vpow.pop %v1054
    %v1056 = vmul.f32 %v999, 1.442695
    %v1057 = vpow.pop %v1056
    %v1058 = vmul.f32 %v1000, 1.442695
    %v1059 = vpow.pop %v1058
    %v1060 = vmul.f32 %v1001, 1.442695
    %v1061 = vpow.pop %v1060
    %v1062 = vmul.f32 %v1002, 1.442695
    %v1063 = vpow.pop %v1062
    %v1064 = vmul.f32 %v1003, 1.442695
    %v1065 = vpow.pop %v1064
    %v1066 = vmul.f32 %v1004, 1.442695
    %v1067 = vpow.pop %v1066
    %v1068 = vmul.f32 %v1005, 1.442695
    %v1069 = vpow.pop %v1068
    %1070 = vst [vmem:[#allocation5] sm:$0xff] %v1007
    %1071 = vst [vmem:[#allocation5 + $0x8] sm:$0xff] %v1009
    %1072 = vst [vmem:[#allocation5 + $0x10] sm:$0xff] %v1011
    %1073 = vst [vmem:[#allocation5 + $0x18] sm:$0xff] %v1013
    %1074 = vst [vmem:[#allocation5 + $0x20] sm:$0xff] %v1015
    %1075 = vst [vmem:[#allocation5 + $0x28] sm:$0xff] %v1017
    %1076 = vst [vmem:[#allocation5 + $0x30] sm:$0xff] %v1019
    %1077 = vst [vmem:[#allocation5 + $0x38] sm:$0xff] %v1021
    %1078 = vst [vmem:[#allocation5 + $0x40] sm:$0xff] %v1023
    %1079 = vst [vmem:[#allocation5 + $0x48] sm:$0xff] %v1025
    %1080 = vst [vmem:[#allocation5 + $0x50] sm:$0xff] %v1027
    %1081 = vst [vmem:[#allocation5 + $0x58] sm:$0xff] %v1029
    %1082 = vst [vmem:[#allocation5 + $0x60] sm:$0xff] %v1031
    %1083 = vst [vmem:[#allocation5 + $0x68] sm:$0xff] %v1033
    %1084 = vst [vmem:[#allocation5 + $0x70] sm:$0xff] %v1035
    %1085 = vst [vmem:[#allocation5 + $0x78] sm:$0xff] %v1037
    %1086 = vst [vmem:[#allocation5 + $0x80] sm:$0xff] %v1039
    %1087 = vst [vmem:[#allocation5 + $0x88] sm:$0xff] %v1041
    %1088 = vst [vmem:[#allocation5 + $0x90] sm:$0xff] %v1043
    %1089 = vst [vmem:[#allocation5 + $0x98] sm:$0xff] %v1045
    %1090 = vst [vmem:[#allocation5 + $0xa0] sm:$0xff] %v1047
    %1091 = vst [vmem:[#allocation5 + $0xa8] sm:$0xff] %v1049
    %1092 = vst [vmem:[#allocation5 + $0xb0] sm:$0xff] %v1051
    %1093 = vst [vmem:[#allocation5 + $0xb8] sm:$0xff] %v1053
    %1094 = vst [vmem:[#allocation5 + $0xc0] sm:$0xff] %v1055
    %1095 = vst [vmem:[#allocation5 + $0xc8] sm:$0xff] %v1057
    %1096 = vst [vmem:[#allocation5 + $0xd0] sm:$0xff] %v1059
    %1097 = vst [vmem:[#allocation5 + $0xd8] sm:$0xff] %v1061
    %1098 = vst [vmem:[#allocation5 + $0xe0] sm:$0xff] %v1063
    %1099 = vst [vmem:[#allocation5 + $0xe8] sm:$0xff] %v1065
    %1100 = vst [vmem:[#allocation5 + $0xf0] sm:$0xff] %v1067
    %1101 = vst [vmem:[#allocation5 + $0xf8] sm:$0xff] %v1069
    %v1102 = vld [vmem:[#allocation2] sm:$0xff]
    %v1103 = vld [vmem:[#allocation2 + $0x8] sm:$0xff]
    %v1104 = vld [vmem:[#allocation2 + $0x10] sm:$0xff]
    %v1105 = vld [vmem:[#allocation2 + $0x18] sm:$0xff]
    %v1106 = vld [vmem:[#allocation2 + $0x20] sm:$0xff]
    %v1107 = vld [vmem:[#allocation2 + $0x28] sm:$0xff]
    %v1108 = vld [vmem:[#allocation2 + $0x30] sm:$0xff]
    %v1109 = vld [vmem:[#allocation2 + $0x38] sm:$0xff]
    %v1110 = vld [vmem:[#allocation2 + $0x40] sm:$0xff]
    %v1111 = vld [vmem:[#allocation2 + $0x48] sm:$0xff]
    %v1112 = vld [vmem:[#allocation2 + $0x50] sm:$0xff]
    %v1113 = vld [vmem:[#allocation2 + $0x58] sm:$0xff]
    %v1114 = vld [vmem:[#allocation2 + $0x60] sm:$0xff]
    %v1115 = vld [vmem:[#allocation2 + $0x68] sm:$0xff]
    %v1116 = vld [vmem:[#allocation2 + $0x70] sm:$0xff]
    %v1117 = vld [vmem:[#allocation2 + $0x78] sm:$0xff]
    %v1118 = vld [vmem:[#allocation2 + $0x80] sm:$0xff]
    %v1119 = vld [vmem:[#allocation2 + $0x88] sm:$0xff]
    %v1120 = vld [vmem:[#allocation2 + $0x90] sm:$0xff]
    %v1121 = vld [vmem:[#allocation2 + $0x98] sm:$0xff]
    %v1122 = vld [vmem:[#allocation2 + $0xa0] sm:$0xff]
    %v1123 = vld [vmem:[#allocation2 + $0xa8] sm:$0xff]
    %v1124 = vld [vmem:[#allocation2 + $0xb0] sm:$0xff]
    %v1125 = vld [vmem:[#allocation2 + $0xb8] sm:$0xff]
    %v1126 = vld [vmem:[#allocation2 + $0xc0] sm:$0xff]
    %v1127 = vld [vmem:[#allocation2 + $0xc8] sm:$0xff]
    %v1128 = vld [vmem:[#allocation2 + $0xd0] sm:$0xff]
    %v1129 = vld [vmem:[#allocation2 + $0xd8] sm:$0xff]
    %v1130 = vld [vmem:[#allocation2 + $0xe0] sm:$0xff]
    %v1131 = vld [vmem:[#allocation2 + $0xe8] sm:$0xff]
    %v1132 = vld [vmem:[#allocation2 + $0xf0] sm:$0xff]
    %v1133 = vld [vmem:[#allocation2 + $0xf8] sm:$0xff]
    %v1134 = vmul.f32 %v1007, %v1102
    %v1135 = vmul.f32 %v1009, %v1103
    %v1136 = vmul.f32 %v1011, %v1104
    %v1137 = vmul.f32 %v1013, %v1105
    %v1138 = vmul.f32 %v1015, %v1106
    %v1139 = vmul.f32 %v1017, %v1107
    %v1140 = vmul.f32 %v1019, %v1108
    %v1141 = vmul.f32 %v1021, %v1109
    %v1142 = vmul.f32 %v1023, %v1110
    %v1143 = vmul.f32 %v1025, %v1111
    %v1144 = vmul.f32 %v1027, %v1112
    %v1145 = vmul.f32 %v1029, %v1113
    %v1146 = vmul.f32 %v1031, %v1114
    %v1147 = vmul.f32 %v1033, %v1115
    %v1148 = vmul.f32 %v1035, %v1116
    %v1149 = vmul.f32 %v1037, %v1117
    %v1150 = vmul.f32 %v1039, %v1118
    %v1151 = vmul.f32 %v1041, %v1119
    %v1152 = vmul.f32 %v1043, %v1120
    %v1153 = vmul.f32 %v1045, %v1121
    %v1154 = vmul.f32 %v1047, %v1122
    %v1155 = vmul.f32 %v1049, %v1123
    %v1156 = vmul.f32 %v1051, %v1124
    %v1157 = vmul.f32 %v1053, %v1125
    %v1158 = vmul.f32 %v1055, %v1126
    %v1159 = vmul.f32 %v1057, %v1127
    %v1160 = vmul.f32 %v1059, %v1128
    %v1161 = vmul.f32 %v1061, %v1129
    %v1162 = vmul.f32 %v1063, %v1130
    %v1163 = vmul.f32 %v1065, %v1131
    %v1164 = vmul.f32 %v1067, %v1132
    %v1165 = vmul.f32 %v1069, %v1133
    %1166 = vadd.xlane.f32.xlu0 %v1134
    %v1167 = vpop.xlane.xlu0 %1166
    %1168 = vadd.xlane.f32.xlu0 %v1135
    %v1169 = vpop.xlane.xlu0 %1168
    %1170 = vadd.xlane.f32.xlu0 %v1136
    %v1171 = vpop.xlane.xlu0 %1170
    %1172 = vadd.xlane.f32.xlu0 %v1137
    %v1173 = vpop.xlane.xlu0 %1172
    %1174 = vadd.xlane.f32.xlu0 %v1138
    %v1175 = vpop.xlane.xlu0 %1174
    %1176 = vadd.xlane.f32.xlu0 %v1139
    %v1177 = vpop.xlane.xlu0 %1176
    %1178 = vadd.xlane.f32.xlu0 %v1140
    %v1179 = vpop.xlane.xlu0 %1178
    %1180 = vadd.xlane.f32.xlu0 %v1141
    %v1181 = vpop.xlane.xlu0 %1180
    %1182 = vadd.xlane.f32.xlu0 %v1142
    %v1183 = vpop.xlane.xlu0 %1182
    %1184 = vadd.xlane.f32.xlu0 %v1143
    %v1185 = vpop.xlane.xlu0 %1184
    %1186 = vadd.xlane.f32.xlu0 %v1144
    %v1187 = vpop.xlane.xlu0 %1186
    %1188 = vadd.xlane.f32.xlu0 %v1145
    %v1189 = vpop.xlane.xlu0 %1188
    %1190 = vadd.xlane.f32.xlu0 %v1146
    %v1191 = vpop.xlane.xlu0 %1190
    %1192 = vadd.xlane.f32.xlu0 %v1147
    %v1193 = vpop.xlane.xlu0 %1192
    %1194 = vadd.xlane.f32.xlu0 %v1148
    %v1195 = vpop.xlane.xlu0 %1194
    %1196 = vadd.xlane.f32.xlu0 %v1149
    %v1197 = vpop.xlane.xlu0 %1196
    %1198 = vadd.xlane.f32.xlu0 %v1150
    %v1199 = vpop.xlane.xlu0 %1198
    %1200 = vadd.xlane.f32.xlu0 %v1151
    %v1201 = vpop.xlane.xlu0 %1200
    %1202 = vadd.xlane.f32.xlu0 %v1152
    %v1203 = vpop.xlane.xlu0 %1202
    %1204 = vadd.xlane.f32.xlu0 %v1153
    %v1205 = vpop.xlane.xlu0 %1204
    %1206 = vadd.xlane.f32.xlu0 %v1154
    %v1207 = vpop.xlane.xlu0 %1206
    %1208 = vadd.xlane.f32.xlu0 %v1155
    %v1209 = vpop.xlane.xlu0 %1208
    %1210 = vadd.xlane.f32.xlu0 %v1156
    %v1211 = vpop.xlane.xlu0 %1210
    %1212 = vadd.xlane.f32.xlu0 %v1157
    %v1213 = vpop.xlane.xlu0 %1212
    %1214 = vadd.xlane.f32.xlu0 %v1158
    %v1215 = vpop.xlane.xlu0 %1214
    %1216 = vadd.xlane.f32.xlu0 %v1159
    %v1217 = vpop.xlane.xlu0 %1216
    %1218 = vadd.xlane.f32.xlu0 %v1160
    %v1219 = vpop.xlane.xlu0 %1218
    %1220 = vadd.xlane.f32.xlu0 %v1161
    %v1221 = vpop.xlane.xlu0 %1220
    %1222 = vadd.xlane.f32.xlu0 %v1162
    %v1223 = vpop.xlane.xlu0 %1222
    %1224 = vadd.xlane.f32.xlu0 %v1163
    %v1225 = vpop.xlane.xlu0 %1224
    %1226 = vadd.xlane.f32.xlu0 %v1164
    %v1227 = vpop.xlane.xlu0 %1226
    %1228 = vadd.xlane.f32.xlu0 %v1165
    %v1229 = vpop.xlane.xlu0 %1228
    %v1230 = vadd.f32 %v1167, %v1169
    %v1231 = vadd.f32 %v1230, %v1171
    %v1232 = vadd.f32 %v1231, %v1173
    %v1233 = vadd.f32 %v1232, %v1175
    %v1234 = vadd.f32 %v1233, %v1177
    %v1235 = vadd.f32 %v1234, %v1179
    %v1236 = vadd.f32 %v1235, %v1181
    %v1237 = vadd.f32 %v1236, %v1183
    %v1238 = vadd.f32 %v1237, %v1185
    %v1239 = vadd.f32 %v1238, %v1187
    %v1240 = vadd.f32 %v1239, %v1189
    %v1241 = vadd.f32 %v1240, %v1191
    %v1242 = vadd.f32 %v1241, %v1193
    %v1243 = vadd.f32 %v1242, %v1195
    %v1244 = vadd.f32 %v1243, %v1197
    %v1245 = vrot.slane %v1244, 4
    %v1246 = vadd.f32 %v1244, %v1245
    %v1247 = vrot.slane %v1246, 2
    %v1248 = vadd.f32 %v1246, %v1247
    %v1249 = vrot.slane %v1248, 1
    %v1250 = vadd.f32 %v1248, %v1249
    %v1251 = vadd.f32 %v1199, %v1201
    %v1252 = vadd.f32 %v1251, %v1203
    %v1253 = vadd.f32 %v1252, %v1205
    %v1254 = vadd.f32 %v1253, %v1207
    %v1255 = vadd.f32 %v1254, %v1209
    %v1256 = vadd.f32 %v1255, %v1211
    %v1257 = vadd.f32 %v1256, %v1213
    %v1258 = vadd.f32 %v1257, %v1215
    %v1259 = vadd.f32 %v1258, %v1217
    %v1260 = vadd.f32 %v1259, %v1219
    %v1261 = vadd.f32 %v1260, %v1221
    %v1262 = vadd.f32 %v1261, %v1223
    %v1263 = vadd.f32 %v1262, %v1225
    %v1264 = vadd.f32 %v1263, %v1227
    %v1265 = vadd.f32 %v1264, %v1229
    %v1266 = vrot.slane %v1265, 4
    %v1267 = vadd.f32 %v1265, %v1266
    %v1268 = vrot.slane %v1267, 2
    %v1269 = vadd.f32 %v1267, %v1268
    %v1270 = vrot.slane %v1269, 1
    %v1271 = vadd.f32 %v1269, %v1270
    %vm1272 = vcmask 0
    %1273 = vst.msk [vmem:[%s1] sm:$0x1] %vm1272, %v1250
    %1274 = vst.msk [vmem:[%s1 + $0x1] sm:$0x1] %vm1272, %v1271
    // Predicated region
    $region17: #{tpu_custom_call.1} parent=1 // pred_check
      _
    $region18: #{tpu_custom_call.1} parent=1 // pred_check_branch
      %1276 = sbr.rel (0) target = $region20
    $region19: #{tpu_custom_call.1} parent=1 // pred_region
      _
    $region20: #{tpu_custom_call.1} parent=1 // pred_fallthru
      _
    // Predicated region
    $region21: #{tpu_custom_call.1} parent=1 // pred_check
      _
    $region22: #{tpu_custom_call.1} parent=1 // pred_check_branch
      %1278 = sbr.rel (0) target = $region24
    $region23: #{tpu_custom_call.1} parent=1 // pred_region
      %s1280 = ssub.s32 4096, 4096
      %1281 = vsyncadd [#allocation4], %s1280
      %s1282 = sshll.u32 [#allocation5], 4
      %s1283 = int_to_ptr.vmem [resolvable:$true] %s1282
      %1288 = dma.vmem_to_hbm [thread:$0]  %s1283, 4096, %s2, [#allocation4], 128, 128, 8
    $region24: #{tpu_custom_call.1} parent=1 // pred_fallthru
      _
    // Predicated region
    $region25: #{tpu_custom_call.1} parent=1 // pred_check
      _
    $region26: #{tpu_custom_call.1} parent=1 // pred_check_branch
      %1290 = sbr.rel (0) target = $region28
    $region27: #{tpu_custom_call.1} parent=1 // pred_region
      _
    $region28: #{tpu_custom_call.1} parent=1 // pred_fallthru
      _
    // Predicated region
    $region29: #{tpu_custom_call.1} parent=1 // pred_check
      _
    $region30: #{tpu_custom_call.1} parent=1 // pred_check_branch
      %1292 = sbr.rel (0) target = $region32
    $region31: #{tpu_custom_call.1} parent=1 // pred_region
      %1293 = dma.done [#allocation4], 4096
    $region32: #{tpu_custom_call.1} parent=1 // pred_fallthru
      _
    %1294 = vsyncpa [#allocation3], 1
    %1295 = vsyncpa [#allocation4], 1

</llo_original>
